<compile_context>
chip_gen: v5e
topology: v5e:2x2
jax: 0.10.0
libtpu: 0.0.40
codegen_flags: <defaults>
</compile_context>

<pallas_src>
import jax
import jax.numpy as jnp
from jax import lax
from jax.experimental import pallas as pl
from jax.experimental.pallas import tpu as pltpu


LANES = 128
SUBLANES = 8
_BLOCK_BYTES = 4 * 1024 * 1024        # target f32 footprint of one input block
_VMEM_LIMIT_BYTES = 48 * 1024 * 1024  # safe on v5e/v6e (128 MiB) and v7x (64 MiB/TC)
_SMALL_BYTES = 512 * 1024             # below this, XLA's fused reduce wins


def _make_sumsq_kernel(block_rows, num_k, tail_rows):
    """sum(z^2) for one batch row, streamed over (block_rows, 128) blocks.

    Emits a lane-dense (8, 128) f32 partial; the final cross-sublane /
    cross-lane reduce happens in JAX glue.  `tail_rows` is None when every
    block is fully in-bounds, otherwise the number of valid rows in the last
    block (rows past it contain garbage and are masked out).
    """
    def kernel(z_ref, o_ref, acc_ref):
        k = pl.program_id(1)

        @pl.when(k == 0)
        def _():
            acc_ref[...] = jnp.zeros_like(acc_ref)

        z = z_ref[...].astype(jnp.float32)           # (block_rows, 128)
        zz = z * z

        def _fold(v):
            # Group sublanes by 8 (vreg-aligned) and add: pure VPU vreg adds,
            # no per-step XLU reduce.
            return v.reshape(-1, SUBLANES, LANES).sum(axis=0)

        if tail_rows is None:
            acc_ref[...] += _fold(zz)
        else:
            @pl.when(k != num_k - 1)
            def _():
                acc_ref[...] += _fold(zz)

            @pl.when(k == num_k - 1)
            def _():
                rid = lax.broadcasted_iota(jnp.int32, (block_rows, LANES), 0)
                acc_ref[...] += _fold(jnp.where(rid < tail_rows, zz, 0.0))

        @pl.when(k == num_k - 1)
        def _():
            o_ref[...] = acc_ref[...]                # lane-dense (8,128) store

    return kernel


def _scale_sumsq(z, *, block_bytes=_BLOCK_BYTES):
    """sum(z**2) over all non-batch dims, per batch row: [B] float32."""
    B = z.shape[0]
    zf = z.reshape(B, -1)                            # free view
    N = zf.shape[1]
    itemsize = jnp.dtype(z.dtype).itemsize
    rows = N // LANES

    if (z.size * itemsize < _SMALL_BYTES) or (N % LANES != 0) or rows < SUBLANES:
        # Tiny scale or feature count not lane-aligned: XLA's fused reduce is
        # already at roofline and avoids pallas_call launch overhead / any
        # padding copy that would re-write the latent through HBM.
        # TODO(synk): a zero-copy Pallas path for N % 128 != 0 would need
        # manual per-row DMA; not worth it for a <128-element tail per row.
        return jnp.sum(zf.astype(jnp.float32) ** 2, axis=1)

    z3 = zf.reshape(B, rows, LANES)                  # free view

    # Biggest multiple-of-8 row block within the f32 budget (dtype-independent
    # so in-kernel f32 temporaries stay bounded).
    budget_rows = max(SUBLANES,
                      (block_bytes // (LANES * 4)) // SUBLANES * SUBLANES)
    if rows % SUBLANES == 0 and rows <= budget_rows:
        block_rows = rows                            # single full-dim block
    else:
        block_rows = min(budget_rows, (rows // SUBLANES) * SUBLANES)
    num_k = -(-rows // block_rows)                   # cdiv grid, no padding
    tail = rows - (num_k - 1) * block_rows
    tail_rows = tail if tail != block_rows else None

    partials = pl.pallas_call(
        _make_sumsq_kernel(block_rows, num_k, tail_rows),
        out_shape=jax.ShapeDtypeStruct((B, SUBLANES, LANES), jnp.float32),
        grid_spec=pltpu.PrefetchScalarGridSpec(
            num_scalar_prefetch=0,
            grid=(B, num_k),
            in_specs=[
                # Squeezed batch dim -> each DMA is one contiguous segment.
                pl.BlockSpec((None, block_rows, LANES), lambda b, k: (b, k, 0)),
            ],
            out_specs=pl.BlockSpec((None, SUBLANES, LANES),
                                   lambda b, k: (b, 0, 0)),
            scratch_shapes=[pltpu.VMEM((SUBLANES, LANES), jnp.float32)],
        ),
        compiler_params=pltpu.CompilerParams(
            dimension_semantics=("parallel", "arbitrary"),
            vmem_limit_bytes=_VMEM_LIMIT_BYTES,
        ),
    )(z3)
    return jnp.sum(partials, axis=(1, 2))            # [B]


def msflow_loss(z_list, jac):
    """z_list: list of [B, C, H, W] arrays; jac: [B]. Returns scalar loss."""
    B = z_list[0].shape[0]
    sumsq = jnp.zeros((B,), jnp.float32)
    for z in z_list:
        sumsq = sumsq + _scale_sumsq(z)
    # 0.5 scale, jac subtract and batch mean are tiny -> JAX glue.
    loss_b = 0.5 * sumsq - jac.astype(jnp.float32)
    return jnp.mean(loss_b)


def _reference_loss(z_list, jac):
    loss = 0.0
    for z in z_list:
        loss = loss + 0.5 * jnp.sum(z.astype(jnp.float32) ** 2, axis=(1, 2, 3))
    loss = loss - jac.astype(jnp.float32)
    return jnp.mean(loss)


if __name__ == "__main__":
    key = jax.random.PRNGKey(0)
    k1, k2, k3, k4, k5 = jax.random.split(key, 5)

    B = 2
    # Multi-scale latents, as MSFlow produces (different C/H/W per scale).
    z_list = [
        jax.random.normal(k1, (B, 256, 32, 32), dtype=jnp.float32),  # Pallas path
        jax.random.normal(k2, (B, 512, 16, 16), dtype=jnp.float32),  # Pallas path
        jax.random.normal(k3, (B, 64, 8, 8), dtype=jnp.float32),     # tiny -> XLA path
    ]
    jac = jax.random.normal(k4, (B,), dtype=jnp.float32)

    loss = msflow_loss(z_list, jac)
    jax.block_until_ready(loss)

    ref = _reference_loss(z_list, jac)
    assert jnp.allclose(loss, ref, rtol=5e-5, atol=1e-3), (loss, ref)

    # Exercise the multi-block + masked-tail path explicitly: rows=514 ->
    # blocks of 128 rows, 5 grid steps, only 2 valid rows in the final block.
    z_odd = jax.random.normal(k5, (B, 257, 16, 16), dtype=jnp.float32)
    got = _scale_sumsq(z_odd, block_bytes=64 * 1024)
    jax.block_until_ready(got)
    want = jnp.sum(z_odd.astype(jnp.float32) ** 2, axis=(1, 2, 3))
    assert jnp.allclose(got, want, rtol=5e-5, atol=1e-3), (got, want)

    print("KERNEL_OK")
</pallas_src>

<mosaic_0001>
module attributes {stable_mosaic.version = 11 : i64} {
  func.func @kernel(%arg0: i32, %arg1: i32, %arg2: memref<1x2048x128xf32, #tpu.memory_space<vmem>>, %arg3: memref<1x8x128xf32, #tpu.memory_space<vmem>>, %arg4: memref<8x128xf32, #tpu.memory_space<vmem>>) attributes {dimension_semantics = [#tpu.dimension_semantics<parallel>, #tpu.dimension_semantics<arbitrary>], iteration_bounds = array<i64: 2, 1>, scalar_prefetch = 0 : i64, scratch_operands = 1 : i64, tpu.core_type = #tpu.core_type<tc>, window_params = [{transform_indices = @transform_0, window_bounds = array<i64: 1, 2048, 128>}, {transform_indices = @transform_1, window_bounds = array<i64: 1, 8, 128>}]} {
    %c0_i32 = arith.constant 0 : i32
    %0 = arith.cmpi eq, %arg1, %c0_i32 : i32
    %1 = arith.extui %0 : i1 to i32
    %c0_i32_0 = arith.constant 0 : i32
    %2 = arith.cmpi ne, %1, %c0_i32_0 : i32
    scf.if %2 {
      %cst_9 = arith.constant 0.000000e+00 : f32
      %14 = vector.broadcast %cst_9 : f32 to vector<8x128xf32>
      %c0_10 = arith.constant 0 : index
      %c0_11 = arith.constant 0 : index
      %15 = vector.load %arg4[%c0_10, %c0_11] : memref<8x128xf32, #tpu.memory_space<vmem>>, vector<8x128xf32>
      tpu.vector_store %arg4[%c0_10, %c0_11], %14 {strides = array<i32>} : memref<8x128xf32, #tpu.memory_space<vmem>>, vector<8x128xf32>,
    } else {
    }
    %c0 = arith.constant 0 : index
    %c0_1 = arith.constant 0 : index
    %c0_2 = arith.constant 0 : index
    %3 = vector.load %arg2[%c0, %c0_1, %c0_2] : memref<1x2048x128xf32, #tpu.memory_space<vmem>>, vector<1x2048x128xf32>
    %4 = vector.shape_cast %3 : vector<1x2048x128xf32> to vector<2048x128xf32>
    %5 = arith.mulf %4, %4 : vector<2048x128xf32>
    %c0_3 = arith.constant 0 : index
    %c0_4 = arith.constant 0 : index
    %6 = vector.load %arg4[%c0_3, %c0_4] : memref<8x128xf32, #tpu.memory_space<vmem>>, vector<8x128xf32>
    %7 = vector.shape_cast %5 : vector<2048x128xf32> to vector<256x8x128xf32>
    %cst = arith.constant dense<0.000000e+00> : vector<8x128xf32>
    %8 = vector.multi_reduction <add>, %7, %cst [0] : vector<256x8x128xf32> to vector<8x128xf32>
    %9 = arith.addf %6, %8 : vector<8x128xf32>
    %c0_5 = arith.constant 0 : index
    %c0_6 = arith.constant 0 : index
    %10 = vector.load %arg4[%c0_5, %c0_6] : memref<8x128xf32, #tpu.memory_space<vmem>>, vector<8x128xf32>
    tpu.vector_store %arg4[%c0_5, %c0_6], %9 {strides = array<i32>} : memref<8x128xf32, #tpu.memory_space<vmem>>, vector<8x128xf32>,
    %c0_i32_7 = arith.constant 0 : i32
    %11 = arith.cmpi eq, %arg1, %c0_i32_7 : i32
    %12 = arith.extui %11 : i1 to i32
    %c0_i32_8 = arith.constant 0 : i32
    %13 = arith.cmpi ne, %12, %c0_i32_8 : i32
    scf.if %13 {
      %c0_9 = arith.constant 0 : index
      %c0_10 = arith.constant 0 : index
      %14 = vector.load %arg4[%c0_9, %c0_10] : memref<8x128xf32, #tpu.memory_space<vmem>>, vector<8x128xf32>
      %c0_11 = arith.constant 0 : index
      %c0_12 = arith.constant 0 : index
      %c0_13 = arith.constant 0 : index
      %15 = vector.load %arg3[%c0_11, %c0_12, %c0_13] : memref<1x8x128xf32, #tpu.memory_space<vmem>>, vector<1x8x128xf32>
      %16 = vector.shape_cast %15 : vector<1x8x128xf32> to vector<8x128xf32>
      %17 = vector.shape_cast %14 : vector<8x128xf32> to vector<1x8x128xf32>
      tpu.vector_store %arg3[%c0_11, %c0_12, %c0_13], %17 {strides = array<i32>} : memref<1x8x128xf32, #tpu.memory_space<vmem>>, vector<1x8x128xf32>,
    } else {
    }
    return
  }
  func.func @transform_0(%arg0: i32, %arg1: i32) -> (i32, i32, i32) {
    %c0_i32 = arith.constant 0 : i32
    %c0_i32_0 = arith.constant 0 : i32
    return %arg0, %arg1, %c0_i32 : i32, i32, i32
  }
  func.func @transform_1(%arg0: i32, %arg1: i32) -> (i32, i32, i32) {
    %c0_i32 = arith.constant 0 : i32
    %c0_i32_0 = arith.constant 0 : i32
    %c0_i32_1 = arith.constant 0 : i32
    return %arg0, %c0_i32, %c0_i32_0 : i32, i32, i32
  }
}

</mosaic_0001>

<llo_original>
// kernel: tpu_custom_call.1
$region0: #{tpu_custom_call.1}
  #allocation0 [shape = 'u32[]', space=smem, size = 0x4, offset = 0x4, fixed_abs, tag = 'smem constant byte address 0x4 - core index']
  #allocation1 [shape = 'u32[72,128]{1,0:T(1,128)}', space=vmem, size = 0x9000, scoped, tag = 'internal scratch']
  #allocation2 [shape = 'f32[8,128]{1,0:T(8,128)}', space=vmem, size = 0x1000, scoped, tag = 'scratch operand']
  %s0 = inlined_call_operand.hbm [shape: f32[2,2048,128], index: 0, kind: input, shape index: {}]
  %s1 = inlined_call_operand.hbm [shape: f32[2,8,128], index: 1, kind: output, shape index: {}]
  %s2 = sld [smem:[#allocation0]]
  $region49: #{tpu_custom_call.1} parent=0
    _
  %s4 = ssub.s32 1, %s2
  %s5 = scalar_select 0, %s4, %s2
  $region1: #{tpu_custom_call.1} parent=0
    #allocation3 [shape = 'u8[2097152]{0}', space=vmem, size = 0x200000, scoped, tag = 'input window, operand 0']
    #allocation4 [shape = 's32[2]{0}', space=sflag, size = 0x8, scoped, tag = 'scoped memory for tpu_custom_call.1']
    #allocation5 [shape = 's32[2]{0}', space=sflag, size = 0x8, scoped, tag = 'scoped memory for tpu_custom_call.1']
    #allocation6 [shape = 'u8[8192]{0}', space=vmem, size = 0x2000, scoped, tag = 'output window, operand 0']
    %6 = vsyncpa [#allocation4], 0
    %s7 = scalar_lea.sflag [#allocation4], 1
    %8 = vsyncpa %s7, 0
    %9 = vsyncpa [#allocation5], 0
    %s10 = scalar_lea.sflag [#allocation5], 1
    %11 = vsyncpa %s10, 0
    loop: start=0, step=1, limit=4
    $region2: #{tpu_custom_call.1} parent=1 // loop_pre_header
      _
    $region3: #{tpu_custom_call.1} parent=1 // loop_header
      %s13 = sphi 0, %s17
      %p14 = scmp.ge.s32.totalorder %s13, 4
      %s20 = sphi 0, %s32
      %s21 = sphi 0, %s28
      %s22 = sphi 0, %s20
      %s23 = sphi 0, %s21
      %s24 = sphi 0, %s22
      %s25 = sphi 0, %s23
      %s37 = sphi 0, %s39
      %s40 = sphi 0, %s37
      %s41 = sphi 0, %s40
      %s57 = sphi 0, %s41
      %s63 = sphi 0, %s65
      %s66 = sphi 0, %s63
      %s67 = sphi 0, %s66
      %s83 = sphi 0, %s67
    $region4: #{tpu_custom_call.1} parent=1 // loop_header_branch
      %16 = sbr.rel (%p14) target = $region8
    $region5: #{tpu_custom_call.1} parent=1 // loop_body
      %s18 = ssub.s32 %s13, 1
      %s19 = ssub.s32 %s13, 2
      %s26 = sadd.s32 1, %s21
      %p27 = scmp.ge.s32.totalorder %s26, 1
      %s28 = scalar_select %p27, 0, %s26
      %s29 = sadd.s32 1, %s20
      %s30 = scalar_select %p27, %s29, %s20
      %p31 = scmp.ge.s32.totalorder %s30, 2
      %s32 = scalar_select %p31, 0, %s30
      %s33 = ssub.s32 %s20, %s32
      %s34 = ssub.s32 %s21, %s28
      %s35 = sor.u32 %s33, %s34
      %p36 = scmp.eq.s32.totalorder %s35, 0
      %s38 = sadd.s32 %s37, 1
      %s39 = scalar_select %p36, %s37, %s38
      %p42 = pneg %p36
      %p43 = scmp.eq.s32.totalorder %s13, 1
      %p44 = por %p42, %p43
      %p45 = scmp.ne.s32.totalorder %s37, %s40
      %p46 = scmp.eq.s32.totalorder %s13, 0
      %p47 = por %p45, %p46
      %p48 = scmp.ne.s32.totalorder %s37, %s40
      %p49 = scmp.eq.s32.totalorder %s18, 1
      %p50 = por %p48, %p49
      %p51 = scmp.ne.s32.totalorder %s40, %s41
      %p52 = scmp.eq.s32.totalorder %s18, 0
      %p53 = por %p51, %p52
      %p54 = scmp.ne.s32.totalorder %s40, %s41
      %p55 = scmp.eq.s32.totalorder %s19, 1
      %p56 = por %p54, %p55
      %p58 = scmp.ne.s32.totalorder %s41, %s57
      %p59 = scmp.eq.s32.totalorder %s19, 0
      %p60 = por %p58, %p59
      %s61 = ssub.s32 %s20, %s32
      %p62 = scmp.eq.s32.totalorder %s61, 0
      %s64 = sadd.s32 %s63, 1
      %s65 = scalar_select %p62, %s63, %s64
      %p68 = pneg %p62
      %p69 = scmp.eq.s32.totalorder %s13, 1
      %p70 = por %p68, %p69
      %p71 = scmp.ne.s32.totalorder %s63, %s66
      %p72 = scmp.eq.s32.totalorder %s13, 0
      %p73 = por %p71, %p72
      %p74 = scmp.ne.s32.totalorder %s63, %s66
      %p75 = scmp.eq.s32.totalorder %s18, 1
      %p76 = por %p74, %p75
      %p77 = scmp.ne.s32.totalorder %s66, %s67
      %p78 = scmp.eq.s32.totalorder %s18, 0
      %p79 = por %p77, %p78
      %p80 = scmp.ne.s32.totalorder %s66, %s67
      %p81 = scmp.eq.s32.totalorder %s19, 1
      %p82 = por %p80, %p81
      %p84 = scmp.ne.s32.totalorder %s67, %s83
      %p85 = scmp.eq.s32.totalorder %s19, 0
      %p86 = por %p84, %p85
      %p87 = scmp.le.s32.totalorder 1, %s13
      %p88 = scmp.lt.s32.totalorder %s13, 3
      %p89 = pnand %p87, %p88
      %p90 = pneg %p89
      // Predicated region
      $region9: #{tpu_custom_call.1} parent=5 // pred_check
        _
      $region10: #{tpu_custom_call.1} parent=5 // pred_check_branch
        %92 = sbr.rel (%p89) target = $region12
      $region11: #{tpu_custom_call.1} parent=5 // pred_region
        %s93 = ssub.s32 %s13, 1
      $region12: #{tpu_custom_call.1} parent=5 // pred_fallthru
        _
      %p94 = scmp.lt.s32.totalorder %s13, 2
      // Predicated region
      $region13: #{tpu_custom_call.1} parent=5 // pred_check
        %p95 = pneg %p94
      $region14: #{tpu_custom_call.1} parent=5 // pred_check_branch
        %97 = sbr.rel (%p95) target = $region16
      $region15: #{tpu_custom_call.1} parent=5 // pred_region
        // Predicated region
        $region17: #{tpu_custom_call.1} parent=15 // pred_check
          %p98 = pneg %p47
        $region18: #{tpu_custom_call.1} parent=15 // pred_check_branch
          %100 = sbr.rel (%p98) target = $region20
        $region19: #{tpu_custom_call.1} parent=15 // pred_region
          %s101 = sand.u32 %s37, 1
          %s102 = scalar_lea.sflag [#allocation4], %s101
          %s103 = sand.u32 %s37, 1
          %s104 = smul.addr %s103, 2048
          %s105 = scalar_lea.vmem [#allocation3], %s104
          %s106 = smul.u32 256, %s21
          %108 = vsyncadd %s102, 0
          %s109 = smul.addr %s20, 256
          %s110 = sadd.s32 %s106, %s109
          %s111 = smul.addr %s110, 8
          %s112 = scalar_lea.hbm %s0, %s111
          %s113 = sshll.u32 %s112, 4
          %s114 = int_to_ptr.hbm [resolvable:$true] %s113
          %s115 = sshll.u32 %s105, 4
          %s116 = int_to_ptr.vmem [resolvable:$true] %s115
          %121 = dma.hbm_to_vmem [thread:$0]  %s114, 32768, %s116, %s102, 128, 128, 8
        $region20: #{tpu_custom_call.1} parent=15 // pred_fallthru
          _
      $region16: #{tpu_custom_call.1} parent=5 // pred_fallthru
        _
      %p122 = scmp.le.s32.totalorder 1, %s13
      %p123 = scmp.lt.s32.totalorder %s13, 3
      %p124 = pnand %p122, %p123
      %p125 = pneg %p124
      // Predicated region
      $region21: #{tpu_custom_call.1} parent=5 // pred_check
        _
      $region22: #{tpu_custom_call.1} parent=5 // pred_check_branch
        %127 = sbr.rel (%p124) target = $region24
      $region23: #{tpu_custom_call.1} parent=5 // pred_region
        %s128 = ssub.s32 %s13, 1
        %s129 = sand.u32 %s40, 1
        %s130 = scalar_lea.sflag [#allocation4], %s129
        %s131 = sand.u32 %s40, 1
        %s132 = smul.addr %s131, 2048
        %s133 = scalar_lea.vmem [#allocation3], %s132
        // Predicated region
        $region25: #{tpu_custom_call.1} parent=23 // pred_check
          %p134 = pneg %p53
        $region26: #{tpu_custom_call.1} parent=23 // pred_check_branch
          %136 = sbr.rel (%p134) target = $region28
        $region27: #{tpu_custom_call.1} parent=23 // pred_region
          %138 = dma.done %s130, 32768
        $region28: #{tpu_custom_call.1} parent=23 // pred_fallthru
          _
        %s139 = sand.u32 %s40, 1
        %s140 = scalar_lea.sflag [#allocation4], %s139
        %s141 = sand.u32 %s40, 1
        %s142 = smul.addr %s141, 2048
        %s143 = scalar_lea.vmem [#allocation3], %s142
        %p144 = pneg %p53
        %p145 = pneg %p50
        %p146 = pneg %p79
        %p147 = pneg %p76
        %s148 = sand.u32 %s66, 1
        %s149 = scalar_lea.sflag [#allocation5], %s148
        %s150 = sand.u32 %s66, 1
        %s151 = smul.addr %s150, 8
        %s152 = scalar_lea.vmem [#allocation6], %s151
        %s153 = smul.u32 256, %s23
        %p154 = scmp.eq.s32.totalorder %s23, 0
        // Predicated region
        $region29: #{tpu_custom_call.1} parent=23 // pred_check
          %p155 = pneg %p154
        $region30: #{tpu_custom_call.1} parent=23 // pred_check_branch
          %157 = sbr.rel (%p155) target = $region32
        $region31: #{tpu_custom_call.1} parent=23 // pred_region
          %158 = vst [vmem:[#allocation2] sm:$0xff] 0.0
        $region32: #{tpu_custom_call.1} parent=23 // pred_fallthru
          _
        %v159 = vld [vmem:[%s133] sm:$0xff]
        %v160 = vld [vmem:[%s133 + $0x8] sm:$0xff]
        %v161 = vld [vmem:[%s133 + $0x10] sm:$0xff]
        %v162 = vld [vmem:[%s133 + $0x18] sm:$0xff]
        %v163 = vld [vmem:[%s133 + $0x20] sm:$0xff]
        %v164 = vld [vmem:[%s133 + $0x28] sm:$0xff]
        %v165 = vld [vmem:[%s133 + $0x30] sm:$0xff]
        %v166 = vld [vmem:[%s133 + $0x38] sm:$0xff]
        %v167 = vld [vmem:[%s133 + $0x40] sm:$0xff]
        %v168 = vld [vmem:[%s133 + $0x48] sm:$0xff]
        %v169 = vld [vmem:[%s133 + $0x50] sm:$0xff]
        %v170 = vld [vmem:[%s133 + $0x58] sm:$0xff]
        %v171 = vld [vmem:[%s133 + $0x60] sm:$0xff]
        %v172 = vld [vmem:[%s133 + $0x68] sm:$0xff]
        %v173 = vld [vmem:[%s133 + $0x70] sm:$0xff]
        %v174 = vld [vmem:[%s133 + $0x78] sm:$0xff]
        %v175 = vld [vmem:[%s133 + $0x80] sm:$0xff]
        %v176 = vld [vmem:[%s133 + $0x88] sm:$0xff]
        %v177 = vld [vmem:[%s133 + $0x90] sm:$0xff]
        %v178 = vld [vmem:[%s133 + $0x98] sm:$0xff]
        %v179 = vld [vmem:[%s133 + $0xa0] sm:$0xff]
        %v180 = vld [vmem:[%s133 + $0xa8] sm:$0xff]
        %v181 = vld [vmem:[%s133 + $0xb0] sm:$0xff]
        %v182 = vld [vmem:[%s133 + $0xb8] sm:$0xff]
        %v183 = vld [vmem:[%s133 + $0xc0] sm:$0xff]
        %v184 = vld [vmem:[%s133 + $0xc8] sm:$0xff]
        %v185 = vld [vmem:[%s133 + $0xd0] sm:$0xff]
        %v186 = vld [vmem:[%s133 + $0xd8] sm:$0xff]
        %v187 = vld [vmem:[%s133 + $0xe0] sm:$0xff]
        %v188 = vld [vmem:[%s133 + $0xe8] sm:$0xff]
        %v189 = vld [vmem:[%s133 + $0xf0] sm:$0xff]
        %v190 = vld [vmem:[%s133 + $0xf8] sm:$0xff]
        %v191 = vld [vmem:[%s133 + $0x100] sm:$0xff]
        %v192 = vld [vmem:[%s133 + $0x108] sm:$0xff]
        %v193 = vld [vmem:[%s133 + $0x110] sm:$0xff]
        %v194 = vld [vmem:[%s133 + $0x118] sm:$0xff]
        %v195 = vld [vmem:[%s133 + $0x120] sm:$0xff]
        %v196 = vld [vmem:[%s133 + $0x128] sm:$0xff]
        %v197 = vld [vmem:[%s133 + $0x130] sm:$0xff]
        %v198 = vld [vmem:[%s133 + $0x138] sm:$0xff]
        %v199 = vld [vmem:[%s133 + $0x140] sm:$0xff]
        %v200 = vld [vmem:[%s133 + $0x148] sm:$0xff]
        %v201 = vld [vmem:[%s133 + $0x150] sm:$0xff]
        %v202 = vld [vmem:[%s133 + $0x158] sm:$0xff]
        %v203 = vld [vmem:[%s133 + $0x160] sm:$0xff]
        %v204 = vld [vmem:[%s133 + $0x168] sm:$0xff]
        %v205 = vld [vmem:[%s133 + $0x170] sm:$0xff]
        %v206 = vld [vmem:[%s133 + $0x178] sm:$0xff]
        %v207 = vld [vmem:[%s133 + $0x180] sm:$0xff]
        %v208 = vld [vmem:[%s133 + $0x188] sm:$0xff]
        %v209 = vld [vmem:[%s133 + $0x190] sm:$0xff]
        %v210 = vld [vmem:[%s133 + $0x198] sm:$0xff]
        %v211 = vld [vmem:[%s133 + $0x1a0] sm:$0xff]
        %v212 = vld [vmem:[%s133 + $0x1a8] sm:$0xff]
        %v213 = vld [vmem:[%s133 + $0x1b0] sm:$0xff]
        %v214 = vld [vmem:[%s133 + $0x1b8] sm:$0xff]
        %v215 = vld [vmem:[%s133 + $0x1c0] sm:$0xff]
        %v216 = vld [vmem:[%s133 + $0x1c8] sm:$0xff]
        %v217 = vld [vmem:[%s133 + $0x1d0] sm:$0xff]
        %v218 = vld [vmem:[%s133 + $0x1d8] sm:$0xff]
        %v219 = vld [vmem:[%s133 + $0x1e0] sm:$0xff]
        %v220 = vld [vmem:[%s133 + $0x1e8] sm:$0xff]
        %v221 = vld [vmem:[%s133 + $0x1f0] sm:$0xff]
        %v222 = vld [vmem:[%s133 + $0x1f8] sm:$0xff]
        %v223 = vld [vmem:[%s133 + $0x200] sm:$0xff]
        %v224 = vld [vmem:[%s133 + $0x208] sm:$0xff]
        %v225 = vld [vmem:[%s133 + $0x210] sm:$0xff]
        %v226 = vld [vmem:[%s133 + $0x218] sm:$0xff]
        %v227 = vld [vmem:[%s133 + $0x220] sm:$0xff]
        %v228 = vld [vmem:[%s133 + $0x228] sm:$0xff]
        %v229 = vld [vmem:[%s133 + $0x230] sm:$0xff]
        %v230 = vld [vmem:[%s133 + $0x238] sm:$0xff]
        %v231 = vld [vmem:[%s133 + $0x240] sm:$0xff]
        %v232 = vld [vmem:[%s133 + $0x248] sm:$0xff]
        %v233 = vld [vmem:[%s133 + $0x250] sm:$0xff]
        %v234 = vld [vmem:[%s133 + $0x258] sm:$0xff]
        %v235 = vld [vmem:[%s133 + $0x260] sm:$0xff]
        %v236 = vld [vmem:[%s133 + $0x268] sm:$0xff]
        %v237 = vld [vmem:[%s133 + $0x270] sm:$0xff]
        %v238 = vld [vmem:[%s133 + $0x278] sm:$0xff]
        %v239 = vld [vmem:[%s133 + $0x280] sm:$0xff]
        %v240 = vld [vmem:[%s133 + $0x288] sm:$0xff]
        %v241 = vld [vmem:[%s133 + $0x290] sm:$0xff]
        %v242 = vld [vmem:[%s133 + $0x298] sm:$0xff]
        %v243 = vld [vmem:[%s133 + $0x2a0] sm:$0xff]
        %v244 = vld [vmem:[%s133 + $0x2a8] sm:$0xff]
        %v245 = vld [vmem:[%s133 + $0x2b0] sm:$0xff]
        %v246 = vld [vmem:[%s133 + $0x2b8] sm:$0xff]
        %v247 = vld [vmem:[%s133 + $0x2c0] sm:$0xff]
        %v248 = vld [vmem:[%s133 + $0x2c8] sm:$0xff]
        %v249 = vld [vmem:[%s133 + $0x2d0] sm:$0xff]
        %v250 = vld [vmem:[%s133 + $0x2d8] sm:$0xff]
        %v251 = vld [vmem:[%s133 + $0x2e0] sm:$0xff]
        %v252 = vld [vmem:[%s133 + $0x2e8] sm:$0xff]
        %v253 = vld [vmem:[%s133 + $0x2f0] sm:$0xff]
        %v254 = vld [vmem:[%s133 + $0x2f8] sm:$0xff]
        %v255 = vld [vmem:[%s133 + $0x300] sm:$0xff]
        %v256 = vld [vmem:[%s133 + $0x308] sm:$0xff]
        %v257 = vld [vmem:[%s133 + $0x310] sm:$0xff]
        %v258 = vld [vmem:[%s133 + $0x318] sm:$0xff]
        %v259 = vld [vmem:[%s133 + $0x320] sm:$0xff]
        %v260 = vld [vmem:[%s133 + $0x328] sm:$0xff]
        %v261 = vld [vmem:[%s133 + $0x330] sm:$0xff]
        %v262 = vld [vmem:[%s133 + $0x338] sm:$0xff]
        %v263 = vld [vmem:[%s133 + $0x340] sm:$0xff]
        %v264 = vld [vmem:[%s133 + $0x348] sm:$0xff]
        %v265 = vld [vmem:[%s133 + $0x350] sm:$0xff]
        %v266 = vld [vmem:[%s133 + $0x358] sm:$0xff]
        %v267 = vld [vmem:[%s133 + $0x360] sm:$0xff]
        %v268 = vld [vmem:[%s133 + $0x368] sm:$0xff]
        %v269 = vld [vmem:[%s133 + $0x370] sm:$0xff]
        %v270 = vld [vmem:[%s133 + $0x378] sm:$0xff]
        %v271 = vld [vmem:[%s133 + $0x380] sm:$0xff]
        %v272 = vld [vmem:[%s133 + $0x388] sm:$0xff]
        %v273 = vld [vmem:[%s133 + $0x390] sm:$0xff]
        %v274 = vld [vmem:[%s133 + $0x398] sm:$0xff]
        %v275 = vld [vmem:[%s133 + $0x3a0] sm:$0xff]
        %v276 = vld [vmem:[%s133 + $0x3a8] sm:$0xff]
        %v277 = vld [vmem:[%s133 + $0x3b0] sm:$0xff]
        %v278 = vld [vmem:[%s133 + $0x3b8] sm:$0xff]
        %v279 = vld [vmem:[%s133 + $0x3c0] sm:$0xff]
        %v280 = vld [vmem:[%s133 + $0x3c8] sm:$0xff]
        %v281 = vld [vmem:[%s133 + $0x3d0] sm:$0xff]
        %v282 = vld [vmem:[%s133 + $0x3d8] sm:$0xff]
        %v283 = vld [vmem:[%s133 + $0x3e0] sm:$0xff]
        %v284 = vld [vmem:[%s133 + $0x3e8] sm:$0xff]
        %v285 = vld [vmem:[%s133 + $0x3f0] sm:$0xff]
        %v286 = vld [vmem:[%s133 + $0x3f8] sm:$0xff]
        %v287 = vld [vmem:[%s133 + $0x400] sm:$0xff]
        %v288 = vld [vmem:[%s133 + $0x408] sm:$0xff]
        %v289 = vld [vmem:[%s133 + $0x410] sm:$0xff]
        %v290 = vld [vmem:[%s133 + $0x418] sm:$0xff]
        %v291 = vld [vmem:[%s133 + $0x420] sm:$0xff]
        %v292 = vld [vmem:[%s133 + $0x428] sm:$0xff]
        %v293 = vld [vmem:[%s133 + $0x430] sm:$0xff]
        %v294 = vld [vmem:[%s133 + $0x438] sm:$0xff]
        %v295 = vld [vmem:[%s133 + $0x440] sm:$0xff]
        %v296 = vld [vmem:[%s133 + $0x448] sm:$0xff]
        %v297 = vld [vmem:[%s133 + $0x450] sm:$0xff]
        %v298 = vld [vmem:[%s133 + $0x458] sm:$0xff]
        %v299 = vld [vmem:[%s133 + $0x460] sm:$0xff]
        %v300 = vld [vmem:[%s133 + $0x468] sm:$0xff]
        %v301 = vld [vmem:[%s133 + $0x470] sm:$0xff]
        %v302 = vld [vmem:[%s133 + $0x478] sm:$0xff]
        %v303 = vld [vmem:[%s133 + $0x480] sm:$0xff]
        %v304 = vld [vmem:[%s133 + $0x488] sm:$0xff]
        %v305 = vld [vmem:[%s133 + $0x490] sm:$0xff]
        %v306 = vld [vmem:[%s133 + $0x498] sm:$0xff]
        %v307 = vld [vmem:[%s133 + $0x4a0] sm:$0xff]
        %v308 = vld [vmem:[%s133 + $0x4a8] sm:$0xff]
        %v309 = vld [vmem:[%s133 + $0x4b0] sm:$0xff]
        %v310 = vld [vmem:[%s133 + $0x4b8] sm:$0xff]
        %v311 = vld [vmem:[%s133 + $0x4c0] sm:$0xff]
        %v312 = vld [vmem:[%s133 + $0x4c8] sm:$0xff]
        %v313 = vld [vmem:[%s133 + $0x4d0] sm:$0xff]
        %v314 = vld [vmem:[%s133 + $0x4d8] sm:$0xff]
        %v315 = vld [vmem:[%s133 + $0x4e0] sm:$0xff]
        %v316 = vld [vmem:[%s133 + $0x4e8] sm:$0xff]
        %v317 = vld [vmem:[%s133 + $0x4f0] sm:$0xff]
        %v318 = vld [vmem:[%s133 + $0x4f8] sm:$0xff]
        %v319 = vld [vmem:[%s133 + $0x500] sm:$0xff]
        %v320 = vld [vmem:[%s133 + $0x508] sm:$0xff]
        %v321 = vld [vmem:[%s133 + $0x510] sm:$0xff]
        %v322 = vld [vmem:[%s133 + $0x518] sm:$0xff]
        %v323 = vld [vmem:[%s133 + $0x520] sm:$0xff]
        %v324 = vld [vmem:[%s133 + $0x528] sm:$0xff]
        %v325 = vld [vmem:[%s133 + $0x530] sm:$0xff]
        %v326 = vld [vmem:[%s133 + $0x538] sm:$0xff]
        %v327 = vld [vmem:[%s133 + $0x540] sm:$0xff]
        %v328 = vld [vmem:[%s133 + $0x548] sm:$0xff]
        %v329 = vld [vmem:[%s133 + $0x550] sm:$0xff]
        %v330 = vld [vmem:[%s133 + $0x558] sm:$0xff]
        %v331 = vld [vmem:[%s133 + $0x560] sm:$0xff]
        %v332 = vld [vmem:[%s133 + $0x568] sm:$0xff]
        %v333 = vld [vmem:[%s133 + $0x570] sm:$0xff]
        %v334 = vld [vmem:[%s133 + $0x578] sm:$0xff]
        %v335 = vld [vmem:[%s133 + $0x580] sm:$0xff]
        %v336 = vld [vmem:[%s133 + $0x588] sm:$0xff]
        %v337 = vld [vmem:[%s133 + $0x590] sm:$0xff]
        %v338 = vld [vmem:[%s133 + $0x598] sm:$0xff]
        %v339 = vld [vmem:[%s133 + $0x5a0] sm:$0xff]
        %v340 = vld [vmem:[%s133 + $0x5a8] sm:$0xff]
        %v341 = vld [vmem:[%s133 + $0x5b0] sm:$0xff]
        %v342 = vld [vmem:[%s133 + $0x5b8] sm:$0xff]
        %v343 = vld [vmem:[%s133 + $0x5c0] sm:$0xff]
        %v344 = vld [vmem:[%s133 + $0x5c8] sm:$0xff]
        %v345 = vld [vmem:[%s133 + $0x5d0] sm:$0xff]
        %v346 = vld [vmem:[%s133 + $0x5d8] sm:$0xff]
        %v347 = vld [vmem:[%s133 + $0x5e0] sm:$0xff]
        %v348 = vld [vmem:[%s133 + $0x5e8] sm:$0xff]
        %v349 = vld [vmem:[%s133 + $0x5f0] sm:$0xff]
        %v350 = vld [vmem:[%s133 + $0x5f8] sm:$0xff]
        %v351 = vld [vmem:[%s133 + $0x600] sm:$0xff]
        %v352 = vld [vmem:[%s133 + $0x608] sm:$0xff]
        %v353 = vld [vmem:[%s133 + $0x610] sm:$0xff]
        %v354 = vld [vmem:[%s133 + $0x618] sm:$0xff]
        %v355 = vld [vmem:[%s133 + $0x620] sm:$0xff]
        %v356 = vld [vmem:[%s133 + $0x628] sm:$0xff]
        %v357 = vld [vmem:[%s133 + $0x630] sm:$0xff]
        %v358 = vld [vmem:[%s133 + $0x638] sm:$0xff]
        %v359 = vld [vmem:[%s133 + $0x640] sm:$0xff]
        %v360 = vld [vmem:[%s133 + $0x648] sm:$0xff]
        %v361 = vld [vmem:[%s133 + $0x650] sm:$0xff]
        %v362 = vld [vmem:[%s133 + $0x658] sm:$0xff]
        %v363 = vld [vmem:[%s133 + $0x660] sm:$0xff]
        %v364 = vld [vmem:[%s133 + $0x668] sm:$0xff]
        %v365 = vld [vmem:[%s133 + $0x670] sm:$0xff]
        %v366 = vld [vmem:[%s133 + $0x678] sm:$0xff]
        %v367 = vld [vmem:[%s133 + $0x680] sm:$0xff]
        %v368 = vld [vmem:[%s133 + $0x688] sm:$0xff]
        %v369 = vld [vmem:[%s133 + $0x690] sm:$0xff]
        %v370 = vld [vmem:[%s133 + $0x698] sm:$0xff]
        %v371 = vld [vmem:[%s133 + $0x6a0] sm:$0xff]
        %v372 = vld [vmem:[%s133 + $0x6a8] sm:$0xff]
        %v373 = vld [vmem:[%s133 + $0x6b0] sm:$0xff]
        %v374 = vld [vmem:[%s133 + $0x6b8] sm:$0xff]
        %v375 = vld [vmem:[%s133 + $0x6c0] sm:$0xff]
        %v376 = vld [vmem:[%s133 + $0x6c8] sm:$0xff]
        %v377 = vld [vmem:[%s133 + $0x6d0] sm:$0xff]
        %v378 = vld [vmem:[%s133 + $0x6d8] sm:$0xff]
        %v379 = vld [vmem:[%s133 + $0x6e0] sm:$0xff]
        %v380 = vld [vmem:[%s133 + $0x6e8] sm:$0xff]
        %v381 = vld [vmem:[%s133 + $0x6f0] sm:$0xff]
        %v382 = vld [vmem:[%s133 + $0x6f8] sm:$0xff]
        %v383 = vld [vmem:[%s133 + $0x700] sm:$0xff]
        %v384 = vld [vmem:[%s133 + $0x708] sm:$0xff]
        %v385 = vld [vmem:[%s133 + $0x710] sm:$0xff]
        %v386 = vld [vmem:[%s133 + $0x718] sm:$0xff]
        %v387 = vld [vmem:[%s133 + $0x720] sm:$0xff]
        %v388 = vld [vmem:[%s133 + $0x728] sm:$0xff]
        %v389 = vld [vmem:[%s133 + $0x730] sm:$0xff]
        %v390 = vld [vmem:[%s133 + $0x738] sm:$0xff]
        %v391 = vld [vmem:[%s133 + $0x740] sm:$0xff]
        %v392 = vld [vmem:[%s133 + $0x748] sm:$0xff]
        %v393 = vld [vmem:[%s133 + $0x750] sm:$0xff]
        %v394 = vld [vmem:[%s133 + $0x758] sm:$0xff]
        %v395 = vld [vmem:[%s133 + $0x760] sm:$0xff]
        %v396 = vld [vmem:[%s133 + $0x768] sm:$0xff]
        %v397 = vld [vmem:[%s133 + $0x770] sm:$0xff]
        %v398 = vld [vmem:[%s133 + $0x778] sm:$0xff]
        %v399 = vld [vmem:[%s133 + $0x780] sm:$0xff]
        %v400 = vld [vmem:[%s133 + $0x788] sm:$0xff]
        %v401 = vld [vmem:[%s133 + $0x790] sm:$0xff]
        %v402 = vld [vmem:[%s133 + $0x798] sm:$0xff]
        %v403 = vld [vmem:[%s133 + $0x7a0] sm:$0xff]
        %v404 = vld [vmem:[%s133 + $0x7a8] sm:$0xff]
        %v405 = vld [vmem:[%s133 + $0x7b0] sm:$0xff]
        %v406 = vld [vmem:[%s133 + $0x7b8] sm:$0xff]
        %v407 = vld [vmem:[%s133 + $0x7c0] sm:$0xff]
        %v408 = vld [vmem:[%s133 + $0x7c8] sm:$0xff]
        %v409 = vld [vmem:[%s133 + $0x7d0] sm:$0xff]
        %v410 = vld [vmem:[%s133 + $0x7d8] sm:$0xff]
        %v411 = vld [vmem:[%s133 + $0x7e0] sm:$0xff]
        %v412 = vld [vmem:[%s133 + $0x7e8] sm:$0xff]
        %v413 = vld [vmem:[%s133 + $0x7f0] sm:$0xff]
        %v414 = vld [vmem:[%s133 + $0x7f8] sm:$0xff]
        %v415 = vmul.f32 %v159, %v159
        %v416 = vmul.f32 %v160, %v160
        %v417 = vmul.f32 %v161, %v161
        %v418 = vmul.f32 %v162, %v162
        %v419 = vmul.f32 %v163, %v163
        %v420 = vmul.f32 %v164, %v164
        %v421 = vmul.f32 %v165, %v165
        %v422 = vmul.f32 %v166, %v166
        %v423 = vmul.f32 %v167, %v167
        %v424 = vmul.f32 %v168, %v168
        %v425 = vmul.f32 %v169, %v169
        %v426 = vmul.f32 %v170, %v170
        %v427 = vmul.f32 %v171, %v171
        %v428 = vmul.f32 %v172, %v172
        %v429 = vmul.f32 %v173, %v173
        %v430 = vmul.f32 %v174, %v174
        %v431 = vmul.f32 %v175, %v175
        %v432 = vmul.f32 %v176, %v176
        %v433 = vmul.f32 %v177, %v177
        %v434 = vmul.f32 %v178, %v178
        %v435 = vmul.f32 %v179, %v179
        %v436 = vmul.f32 %v180, %v180
        %v437 = vmul.f32 %v181, %v181
        %v438 = vmul.f32 %v182, %v182
        %v439 = vmul.f32 %v183, %v183
        %v440 = vmul.f32 %v184, %v184
        %v441 = vmul.f32 %v185, %v185
        %v442 = vmul.f32 %v186, %v186
        %v443 = vmul.f32 %v187, %v187
        %v444 = vmul.f32 %v188, %v188
        %v445 = vmul.f32 %v189, %v189
        %v446 = vmul.f32 %v190, %v190
        %v447 = vmul.f32 %v191, %v191
        %v448 = vmul.f32 %v192, %v192
        %v449 = vmul.f32 %v193, %v193
        %v450 = vmul.f32 %v194, %v194
        %v451 = vmul.f32 %v195, %v195
        %v452 = vmul.f32 %v196, %v196
        %v453 = vmul.f32 %v197, %v197
        %v454 = vmul.f32 %v198, %v198
        %v455 = vmul.f32 %v199, %v199
        %v456 = vmul.f32 %v200, %v200
        %v457 = vmul.f32 %v201, %v201
        %v458 = vmul.f32 %v202, %v202
        %v459 = vmul.f32 %v203, %v203
        %v460 = vmul.f32 %v204, %v204
        %v461 = vmul.f32 %v205, %v205
        %v462 = vmul.f32 %v206, %v206
        %v463 = vmul.f32 %v207, %v207
        %v464 = vmul.f32 %v208, %v208
        %v465 = vmul.f32 %v209, %v209
        %v466 = vmul.f32 %v210, %v210
        %v467 = vmul.f32 %v211, %v211
        %v468 = vmul.f32 %v212, %v212
        %v469 = vmul.f32 %v213, %v213
        %v470 = vmul.f32 %v214, %v214
        %v471 = vmul.f32 %v215, %v215
        %v472 = vmul.f32 %v216, %v216
        %v473 = vmul.f32 %v217, %v217
        %v474 = vmul.f32 %v218, %v218
        %v475 = vmul.f32 %v219, %v219
        %v476 = vmul.f32 %v220, %v220
        %v477 = vmul.f32 %v221, %v221
        %v478 = vmul.f32 %v222, %v222
        %v479 = vmul.f32 %v223, %v223
        %v480 = vmul.f32 %v224, %v224
        %v481 = vmul.f32 %v225, %v225
        %v482 = vmul.f32 %v226, %v226
        %v483 = vmul.f32 %v227, %v227
        %v484 = vmul.f32 %v228, %v228
        %v485 = vmul.f32 %v229, %v229
        %v486 = vmul.f32 %v230, %v230
        %v487 = vmul.f32 %v231, %v231
        %v488 = vmul.f32 %v232, %v232
        %v489 = vmul.f32 %v233, %v233
        %v490 = vmul.f32 %v234, %v234
        %v491 = vmul.f32 %v235, %v235
        %v492 = vmul.f32 %v236, %v236
        %v493 = vmul.f32 %v237, %v237
        %v494 = vmul.f32 %v238, %v238
        %v495 = vmul.f32 %v239, %v239
        %v496 = vmul.f32 %v240, %v240
        %v497 = vmul.f32 %v241, %v241
        %v498 = vmul.f32 %v242, %v242
        %v499 = vmul.f32 %v243, %v243
        %v500 = vmul.f32 %v244, %v244
        %v501 = vmul.f32 %v245, %v245
        %v502 = vmul.f32 %v246, %v246
        %v503 = vmul.f32 %v247, %v247
        %v504 = vmul.f32 %v248, %v248
        %v505 = vmul.f32 %v249, %v249
        %v506 = vmul.f32 %v250, %v250
        %v507 = vmul.f32 %v251, %v251
        %v508 = vmul.f32 %v252, %v252
        %v509 = vmul.f32 %v253, %v253
        %v510 = vmul.f32 %v254, %v254
        %v511 = vmul.f32 %v255, %v255
        %v512 = vmul.f32 %v256, %v256
        %v513 = vmul.f32 %v257, %v257
        %v514 = vmul.f32 %v258, %v258
        %v515 = vmul.f32 %v259, %v259
        %v516 = vmul.f32 %v260, %v260
        %v517 = vmul.f32 %v261, %v261
        %v518 = vmul.f32 %v262, %v262
        %v519 = vmul.f32 %v263, %v263
        %v520 = vmul.f32 %v264, %v264
        %v521 = vmul.f32 %v265, %v265
        %v522 = vmul.f32 %v266, %v266
        %v523 = vmul.f32 %v267, %v267
        %v524 = vmul.f32 %v268, %v268
        %v525 = vmul.f32 %v269, %v269
        %v526 = vmul.f32 %v270, %v270
        %v527 = vmul.f32 %v271, %v271
        %v528 = vmul.f32 %v272, %v272
        %v529 = vmul.f32 %v273, %v273
        %v530 = vmul.f32 %v274, %v274
        %v531 = vmul.f32 %v275, %v275
        %v532 = vmul.f32 %v276, %v276
        %v533 = vmul.f32 %v277, %v277
        %v534 = vmul.f32 %v278, %v278
        %v535 = vmul.f32 %v279, %v279
        %v536 = vmul.f32 %v280, %v280
        %v537 = vmul.f32 %v281, %v281
        %v538 = vmul.f32 %v282, %v282
        %v539 = vmul.f32 %v283, %v283
        %v540 = vmul.f32 %v284, %v284
        %v541 = vmul.f32 %v285, %v285
        %v542 = vmul.f32 %v286, %v286
        %v543 = vmul.f32 %v287, %v287
        %v544 = vmul.f32 %v288, %v288
        %v545 = vmul.f32 %v289, %v289
        %v546 = vmul.f32 %v290, %v290
        %v547 = vmul.f32 %v291, %v291
        %v548 = vmul.f32 %v292, %v292
        %v549 = vmul.f32 %v293, %v293
        %v550 = vmul.f32 %v294, %v294
        %v551 = vmul.f32 %v295, %v295
        %v552 = vmul.f32 %v296, %v296
        %v553 = vmul.f32 %v297, %v297
        %v554 = vmul.f32 %v298, %v298
        %v555 = vmul.f32 %v299, %v299
        %v556 = vmul.f32 %v300, %v300
        %v557 = vmul.f32 %v301, %v301
        %v558 = vmul.f32 %v302, %v302
        %v559 = vmul.f32 %v303, %v303
        %v560 = vmul.f32 %v304, %v304
        %v561 = vmul.f32 %v305, %v305
        %v562 = vmul.f32 %v306, %v306
        %v563 = vmul.f32 %v307, %v307
        %v564 = vmul.f32 %v308, %v308
        %v565 = vmul.f32 %v309, %v309
        %v566 = vmul.f32 %v310, %v310
        %v567 = vmul.f32 %v311, %v311
        %v568 = vmul.f32 %v312, %v312
        %v569 = vmul.f32 %v313, %v313
        %v570 = vmul.f32 %v314, %v314
        %v571 = vmul.f32 %v315, %v315
        %v572 = vmul.f32 %v316, %v316
        %v573 = vmul.f32 %v317, %v317
        %v574 = vmul.f32 %v318, %v318
        %v575 = vmul.f32 %v319, %v319
        %v576 = vmul.f32 %v320, %v320
        %v577 = vmul.f32 %v321, %v321
        %v578 = vmul.f32 %v322, %v322
        %v579 = vmul.f32 %v323, %v323
        %v580 = vmul.f32 %v324, %v324
        %v581 = vmul.f32 %v325, %v325
        %v582 = vmul.f32 %v326, %v326
        %v583 = vmul.f32 %v327, %v327
        %v584 = vmul.f32 %v328, %v328
        %v585 = vmul.f32 %v329, %v329
        %v586 = vmul.f32 %v330, %v330
        %v587 = vmul.f32 %v331, %v331
        %v588 = vmul.f32 %v332, %v332
        %v589 = vmul.f32 %v333, %v333
        %v590 = vmul.f32 %v334, %v334
        %v591 = vmul.f32 %v335, %v335
        %v592 = vmul.f32 %v336, %v336
        %v593 = vmul.f32 %v337, %v337
        %v594 = vmul.f32 %v338, %v338
        %v595 = vmul.f32 %v339, %v339
        %v596 = vmul.f32 %v340, %v340
        %v597 = vmul.f32 %v341, %v341
        %v598 = vmul.f32 %v342, %v342
        %v599 = vmul.f32 %v343, %v343
        %v600 = vmul.f32 %v344, %v344
        %v601 = vmul.f32 %v345, %v345
        %v602 = vmul.f32 %v346, %v346
        %v603 = vmul.f32 %v347, %v347
        %v604 = vmul.f32 %v348, %v348
        %v605 = vmul.f32 %v349, %v349
        %v606 = vmul.f32 %v350, %v350
        %v607 = vmul.f32 %v351, %v351
        %v608 = vmul.f32 %v352, %v352
        %v609 = vmul.f32 %v353, %v353
        %v610 = vmul.f32 %v354, %v354
        %v611 = vmul.f32 %v355, %v355
        %v612 = vmul.f32 %v356, %v356
        %v613 = vmul.f32 %v357, %v357
        %v614 = vmul.f32 %v358, %v358
        %v615 = vmul.f32 %v359, %v359
        %v616 = vmul.f32 %v360, %v360
        %v617 = vmul.f32 %v361, %v361
        %v618 = vmul.f32 %v362, %v362
        %v619 = vmul.f32 %v363, %v363
        %v620 = vmul.f32 %v364, %v364
        %v621 = vmul.f32 %v365, %v365
        %v622 = vmul.f32 %v366, %v366
        %v623 = vmul.f32 %v367, %v367
        %v624 = vmul.f32 %v368, %v368
        %v625 = vmul.f32 %v369, %v369
        %v626 = vmul.f32 %v370, %v370
        %v627 = vmul.f32 %v371, %v371
        %v628 = vmul.f32 %v372, %v372
        %v629 = vmul.f32 %v373, %v373
        %v630 = vmul.f32 %v374, %v374
        %v631 = vmul.f32 %v375, %v375
        %v632 = vmul.f32 %v376, %v376
        %v633 = vmul.f32 %v377, %v377
        %v634 = vmul.f32 %v378, %v378
        %v635 = vmul.f32 %v379, %v379
        %v636 = vmul.f32 %v380, %v380
        %v637 = vmul.f32 %v381, %v381
        %v638 = vmul.f32 %v382, %v382
        %v639 = vmul.f32 %v383, %v383
        %v640 = vmul.f32 %v384, %v384
        %v641 = vmul.f32 %v385, %v385
        %v642 = vmul.f32 %v386, %v386
        %v643 = vmul.f32 %v387, %v387
        %v644 = vmul.f32 %v388, %v388
        %v645 = vmul.f32 %v389, %v389
        %v646 = vmul.f32 %v390, %v390
        %v647 = vmul.f32 %v391, %v391
        %v648 = vmul.f32 %v392, %v392
        %v649 = vmul.f32 %v393, %v393
        %v650 = vmul.f32 %v394, %v394
        %v651 = vmul.f32 %v395, %v395
        %v652 = vmul.f32 %v396, %v396
        %v653 = vmul.f32 %v397, %v397
        %v654 = vmul.f32 %v398, %v398
        %v655 = vmul.f32 %v399, %v399
        %v656 = vmul.f32 %v400, %v400
        %v657 = vmul.f32 %v401, %v401
        %v658 = vmul.f32 %v402, %v402
        %v659 = vmul.f32 %v403, %v403
        %v660 = vmul.f32 %v404, %v404
        %v661 = vmul.f32 %v405, %v405
        %v662 = vmul.f32 %v406, %v406
        %v663 = vmul.f32 %v407, %v407
        %v664 = vmul.f32 %v408, %v408
        %v665 = vmul.f32 %v409, %v409
        %v666 = vmul.f32 %v410, %v410
        %v667 = vmul.f32 %v411, %v411
        %v668 = vmul.f32 %v412, %v412
        %v669 = vmul.f32 %v413, %v413
        %v670 = vmul.f32 %v414, %v414
        %v671 = vld [vmem:[#allocation2] sm:$0xff]
        %v672 = vadd.f32 %v415, %v416
        %v673 = vadd.f32 %v672, %v417
        %v674 = vadd.f32 %v673, %v418
        %v675 = vadd.f32 %v674, %v419
        %v676 = vadd.f32 %v675, %v420
        %v677 = vadd.f32 %v676, %v421
        %v678 = vadd.f32 %v677, %v422
        %v679 = vadd.f32 %v678, %v423
        %v680 = vadd.f32 %v679, %v424
        %v681 = vadd.f32 %v680, %v425
        %v682 = vadd.f32 %v681, %v426
        %v683 = vadd.f32 %v682, %v427
        %v684 = vadd.f32 %v683, %v428
        %v685 = vadd.f32 %v684, %v429
        %v686 = vadd.f32 %v685, %v430
        %v687 = vadd.f32 %v686, %v431
        %v688 = vadd.f32 %v687, %v432
        %v689 = vadd.f32 %v688, %v433
        %v690 = vadd.f32 %v689, %v434
        %v691 = vadd.f32 %v690, %v435
        %v692 = vadd.f32 %v691, %v436
        %v693 = vadd.f32 %v692, %v437
        %v694 = vadd.f32 %v693, %v438
        %v695 = vadd.f32 %v694, %v439
        %v696 = vadd.f32 %v695, %v440
        %v697 = vadd.f32 %v696, %v441
        %v698 = vadd.f32 %v697, %v442
        %v699 = vadd.f32 %v698, %v443
        %v700 = vadd.f32 %v699, %v444
        %v701 = vadd.f32 %v700, %v445
        %v702 = vadd.f32 %v701, %v446
        %v703 = vadd.f32 %v702, %v447
        %v704 = vadd.f32 %v703, %v448
        %v705 = vadd.f32 %v704, %v449
        %v706 = vadd.f32 %v705, %v450
        %v707 = vadd.f32 %v706, %v451
        %v708 = vadd.f32 %v707, %v452
        %v709 = vadd.f32 %v708, %v453
        %v710 = vadd.f32 %v709, %v454
        %v711 = vadd.f32 %v710, %v455
        %v712 = vadd.f32 %v711, %v456
        %v713 = vadd.f32 %v712, %v457
        %v714 = vadd.f32 %v713, %v458
        %v715 = vadd.f32 %v714, %v459
        %v716 = vadd.f32 %v715, %v460
        %v717 = vadd.f32 %v716, %v461
        %v718 = vadd.f32 %v717, %v462
        %v719 = vadd.f32 %v718, %v463
        %v720 = vadd.f32 %v719, %v464
        %v721 = vadd.f32 %v720, %v465
        %v722 = vadd.f32 %v721, %v466
        %v723 = vadd.f32 %v722, %v467
        %v724 = vadd.f32 %v723, %v468
        %v725 = vadd.f32 %v724, %v469
        %v726 = vadd.f32 %v725, %v470
        %v727 = vadd.f32 %v726, %v471
        %v728 = vadd.f32 %v727, %v472
        %v729 = vadd.f32 %v728, %v473
        %v730 = vadd.f32 %v729, %v474
        %v731 = vadd.f32 %v730, %v475
        %v732 = vadd.f32 %v731, %v476
        %v733 = vadd.f32 %v732, %v477
        %v734 = vadd.f32 %v733, %v478
        %v735 = vadd.f32 %v734, %v479
        %v736 = vadd.f32 %v735, %v480
        %v737 = vadd.f32 %v736, %v481
        %v738 = vadd.f32 %v737, %v482
        %v739 = vadd.f32 %v738, %v483
        %v740 = vadd.f32 %v739, %v484
        %v741 = vadd.f32 %v740, %v485
        %v742 = vadd.f32 %v741, %v486
        %v743 = vadd.f32 %v742, %v487
        %v744 = vadd.f32 %v743, %v488
        %v745 = vadd.f32 %v744, %v489
        %v746 = vadd.f32 %v745, %v490
        %v747 = vadd.f32 %v746, %v491
        %v748 = vadd.f32 %v747, %v492
        %v749 = vadd.f32 %v748, %v493
        %v750 = vadd.f32 %v749, %v494
        %v751 = vadd.f32 %v750, %v495
        %v752 = vadd.f32 %v751, %v496
        %v753 = vadd.f32 %v752, %v497
        %v754 = vadd.f32 %v753, %v498
        %v755 = vadd.f32 %v754, %v499
        %v756 = vadd.f32 %v755, %v500
        %v757 = vadd.f32 %v756, %v501
        %v758 = vadd.f32 %v757, %v502
        %v759 = vadd.f32 %v758, %v503
        %v760 = vadd.f32 %v759, %v504
        %v761 = vadd.f32 %v760, %v505
        %v762 = vadd.f32 %v761, %v506
        %v763 = vadd.f32 %v762, %v507
        %v764 = vadd.f32 %v763, %v508
        %v765 = vadd.f32 %v764, %v509
        %v766 = vadd.f32 %v765, %v510
        %v767 = vadd.f32 %v766, %v511
        %v768 = vadd.f32 %v767, %v512
        %v769 = vadd.f32 %v768, %v513
        %v770 = vadd.f32 %v769, %v514
        %v771 = vadd.f32 %v770, %v515
        %v772 = vadd.f32 %v771, %v516
        %v773 = vadd.f32 %v772, %v517
        %v774 = vadd.f32 %v773, %v518
        %v775 = vadd.f32 %v774, %v519
        %v776 = vadd.f32 %v775, %v520
        %v777 = vadd.f32 %v776, %v521
        %v778 = vadd.f32 %v777, %v522
        %v779 = vadd.f32 %v778, %v523
        %v780 = vadd.f32 %v779, %v524
        %v781 = vadd.f32 %v780, %v525
        %v782 = vadd.f32 %v781, %v526
        %v783 = vadd.f32 %v782, %v527
        %v784 = vadd.f32 %v783, %v528
        %v785 = vadd.f32 %v784, %v529
        %v786 = vadd.f32 %v785, %v530
        %v787 = vadd.f32 %v786, %v531
        %v788 = vadd.f32 %v787, %v532
        %v789 = vadd.f32 %v788, %v533
        %v790 = vadd.f32 %v789, %v534
        %v791 = vadd.f32 %v790, %v535
        %v792 = vadd.f32 %v791, %v536
        %v793 = vadd.f32 %v792, %v537
        %v794 = vadd.f32 %v793, %v538
        %v795 = vadd.f32 %v794, %v539
        %v796 = vadd.f32 %v795, %v540
        %v797 = vadd.f32 %v796, %v541
        %v798 = vadd.f32 %v797, %v542
        %v799 = vadd.f32 %v798, %v543
        %v800 = vadd.f32 %v799, %v544
        %v801 = vadd.f32 %v800, %v545
        %v802 = vadd.f32 %v801, %v546
        %v803 = vadd.f32 %v802, %v547
        %v804 = vadd.f32 %v803, %v548
        %v805 = vadd.f32 %v804, %v549
        %v806 = vadd.f32 %v805, %v550
        %v807 = vadd.f32 %v806, %v551
        %v808 = vadd.f32 %v807, %v552
        %v809 = vadd.f32 %v808, %v553
        %v810 = vadd.f32 %v809, %v554
        %v811 = vadd.f32 %v810, %v555
        %v812 = vadd.f32 %v811, %v556
        %v813 = vadd.f32 %v812, %v557
        %v814 = vadd.f32 %v813, %v558
        %v815 = vadd.f32 %v814, %v559
        %v816 = vadd.f32 %v815, %v560
        %v817 = vadd.f32 %v816, %v561
        %v818 = vadd.f32 %v817, %v562
        %v819 = vadd.f32 %v818, %v563
        %v820 = vadd.f32 %v819, %v564
        %v821 = vadd.f32 %v820, %v565
        %v822 = vadd.f32 %v821, %v566
        %v823 = vadd.f32 %v822, %v567
        %v824 = vadd.f32 %v823, %v568
        %v825 = vadd.f32 %v824, %v569
        %v826 = vadd.f32 %v825, %v570
        %v827 = vadd.f32 %v826, %v571
        %v828 = vadd.f32 %v827, %v572
        %v829 = vadd.f32 %v828, %v573
        %v830 = vadd.f32 %v829, %v574
        %v831 = vadd.f32 %v830, %v575
        %v832 = vadd.f32 %v831, %v576
        %v833 = vadd.f32 %v832, %v577
        %v834 = vadd.f32 %v833, %v578
        %v835 = vadd.f32 %v834, %v579
        %v836 = vadd.f32 %v835, %v580
        %v837 = vadd.f32 %v836, %v581
        %v838 = vadd.f32 %v837, %v582
        %v839 = vadd.f32 %v838, %v583
        %v840 = vadd.f32 %v839, %v584
        %v841 = vadd.f32 %v840, %v585
        %v842 = vadd.f32 %v841, %v586
        %v843 = vadd.f32 %v842, %v587
        %v844 = vadd.f32 %v843, %v588
        %v845 = vadd.f32 %v844, %v589
        %v846 = vadd.f32 %v845, %v590
        %v847 = vadd.f32 %v846, %v591
        %v848 = vadd.f32 %v847, %v592
        %v849 = vadd.f32 %v848, %v593
        %v850 = vadd.f32 %v849, %v594
        %v851 = vadd.f32 %v850, %v595
        %v852 = vadd.f32 %v851, %v596
        %v853 = vadd.f32 %v852, %v597
        %v854 = vadd.f32 %v853, %v598
        %v855 = vadd.f32 %v854, %v599
        %v856 = vadd.f32 %v855, %v600
        %v857 = vadd.f32 %v856, %v601
        %v858 = vadd.f32 %v857, %v602
        %v859 = vadd.f32 %v858, %v603
        %v860 = vadd.f32 %v859, %v604
        %v861 = vadd.f32 %v860, %v605
        %v862 = vadd.f32 %v861, %v606
        %v863 = vadd.f32 %v862, %v607
        %v864 = vadd.f32 %v863, %v608
        %v865 = vadd.f32 %v864, %v609
        %v866 = vadd.f32 %v865, %v610
        %v867 = vadd.f32 %v866, %v611
        %v868 = vadd.f32 %v867, %v612
        %v869 = vadd.f32 %v868, %v613
        %v870 = vadd.f32 %v869, %v614
        %v871 = vadd.f32 %v870, %v615
        %v872 = vadd.f32 %v871, %v616
        %v873 = vadd.f32 %v872, %v617
        %v874 = vadd.f32 %v873, %v618
        %v875 = vadd.f32 %v874, %v619
        %v876 = vadd.f32 %v875, %v620
        %v877 = vadd.f32 %v876, %v621
        %v878 = vadd.f32 %v877, %v622
        %v879 = vadd.f32 %v878, %v623
        %v880 = vadd.f32 %v879, %v624
        %v881 = vadd.f32 %v880, %v625
        %v882 = vadd.f32 %v881, %v626
        %v883 = vadd.f32 %v882, %v627
        %v884 = vadd.f32 %v883, %v628
        %v885 = vadd.f32 %v884, %v629
        %v886 = vadd.f32 %v885, %v630
        %v887 = vadd.f32 %v886, %v631
        %v888 = vadd.f32 %v887, %v632
        %v889 = vadd.f32 %v888, %v633
        %v890 = vadd.f32 %v889, %v634
        %v891 = vadd.f32 %v890, %v635
        %v892 = vadd.f32 %v891, %v636
        %v893 = vadd.f32 %v892, %v637
        %v894 = vadd.f32 %v893, %v638
        %v895 = vadd.f32 %v894, %v639
        %v896 = vadd.f32 %v895, %v640
        %v897 = vadd.f32 %v896, %v641
        %v898 = vadd.f32 %v897, %v642
        %v899 = vadd.f32 %v898, %v643
        %v900 = vadd.f32 %v899, %v644
        %v901 = vadd.f32 %v900, %v645
        %v902 = vadd.f32 %v901, %v646
        %v903 = vadd.f32 %v902, %v647
        %v904 = vadd.f32 %v903, %v648
        %v905 = vadd.f32 %v904, %v649
        %v906 = vadd.f32 %v905, %v650
        %v907 = vadd.f32 %v906, %v651
        %v908 = vadd.f32 %v907, %v652
        %v909 = vadd.f32 %v908, %v653
        %v910 = vadd.f32 %v909, %v654
        %v911 = vadd.f32 %v910, %v655
        %v912 = vadd.f32 %v911, %v656
        %v913 = vadd.f32 %v912, %v657
        %v914 = vadd.f32 %v913, %v658
        %v915 = vadd.f32 %v914, %v659
        %v916 = vadd.f32 %v915, %v660
        %v917 = vadd.f32 %v916, %v661
        %v918 = vadd.f32 %v917, %v662
        %v919 = vadd.f32 %v918, %v663
        %v920 = vadd.f32 %v919, %v664
        %v921 = vadd.f32 %v920, %v665
        %v922 = vadd.f32 %v921, %v666
        %v923 = vadd.f32 %v922, %v667
        %v924 = vadd.f32 %v923, %v668
        %v925 = vadd.f32 %v924, %v669
        %v926 = vadd.f32 %v925, %v670
        %v927 = vadd.f32 %v671, %v926
        %928 = vst [vmem:[#allocation2] sm:$0xff] %v927
        // Predicated region
        $region33: #{tpu_custom_call.1} parent=23 // pred_check
          %p929 = pneg %p154
        $region34: #{tpu_custom_call.1} parent=23 // pred_check_branch
          %931 = sbr.rel (%p929) target = $region36
        $region35: #{tpu_custom_call.1} parent=23 // pred_region
          %v932 = vld [vmem:[#allocation2] sm:$0xff]
          %933 = vst [vmem:[%s152] sm:$0xff] %v932
        $region36: #{tpu_custom_call.1} parent=23 // pred_fallthru
          _
        %s934 = sand.u32 %s66, 1
        %s935 = scalar_lea.sflag [#allocation5], %s934
        %s936 = sand.u32 %s66, 1
        %s937 = smul.addr %s936, 8
        %s938 = scalar_lea.vmem [#allocation6], %s937
        // Predicated region
        $region37: #{tpu_custom_call.1} parent=23 // pred_check
          %p939 = pneg %p76
        $region38: #{tpu_custom_call.1} parent=23 // pred_check_branch
          %941 = sbr.rel (%p939) target = $region40
        $region39: #{tpu_custom_call.1} parent=23 // pred_region
          %943 = vsyncadd %s935, 0
          %s944 = smul.addr %s22, 8
          %s945 = scalar_lea.hbm %s1, %s944
          %s947 = sshll.u32 %s938, 4
          %s948 = int_to_ptr.vmem [resolvable:$true] %s947
          %s949 = sshll.u32 %s945, 4
          %s950 = int_to_ptr.hbm [resolvable:$true] %s949
          %952 = dma.vmem_to_hbm [thread:$0]  %s948, 128, %s950, %s935
        $region40: #{tpu_custom_call.1} parent=23 // pred_fallthru
          _
      $region24: #{tpu_custom_call.1} parent=5 // pred_fallthru
        _
      %p953 = scmp.le.s32.totalorder 2, %s13
      // Predicated region
      $region41: #{tpu_custom_call.1} parent=5 // pred_check
        %p954 = pneg %p953
      $region42: #{tpu_custom_call.1} parent=5 // pred_check_branch
        %956 = sbr.rel (%p954) target = $region44
      $region43: #{tpu_custom_call.1} parent=5 // pred_region
        %s957 = ssub.s32 %s13, 2
        // Predicated region
        $region45: #{tpu_custom_call.1} parent=43 // pred_check
          %p958 = pneg %p82
        $region46: #{tpu_custom_call.1} parent=43 // pred_check_branch
          %960 = sbr.rel (%p958) target = $region48
        $region47: #{tpu_custom_call.1} parent=43 // pred_region
          %s961 = sand.u32 %s67, 1
          %s962 = scalar_lea.sflag [#allocation5], %s961
          %s963 = sand.u32 %s67, 1
          %s964 = smul.addr %s963, 8
          %s965 = scalar_lea.vmem [#allocation6], %s964
          %967 = dma.done %s962, 128
        $region48: #{tpu_custom_call.1} parent=43 // pred_fallthru
          _
      $region44: #{tpu_custom_call.1} parent=5 // pred_fallthru
        _
    $region6: #{tpu_custom_call.1} parent=1 // loop_footer
      %s17 = sadd.s32 1, %s13
    $region7: #{tpu_custom_call.1} parent=1 // loop_footer_branch
      %12 = sbr.rel target = $region3
    $region8: #{tpu_custom_call.1} parent=1 // loop_exit
      _
    %968 = vsyncpa [#allocation4], 1
    %s969 = scalar_lea.sflag [#allocation4], 1
    %970 = vsyncpa %s969, 1
    %971 = vsyncpa [#allocation5], 1
    %s972 = scalar_lea.sflag [#allocation5], 1
    %973 = vsyncpa %s972, 1

</llo_original>
